<compile_context>
chip_gen: v7x
topology: tpu7x:2x2x1
jax: 0.10.0
libtpu: 0.0.40
codegen_flags: <defaults>
</compile_context>

<pallas_src>
import jax
import jax.numpy as jnp
from jax import lax
from jax.experimental import pallas as pl
from jax.experimental.pallas import tpu as pltpu

HIDDEN_SIZE = 20
INPUT_SIZE = 1
OUTPUT_SIZE = 1


def _round_up(x, m):
    return ((x + m - 1) // m) * m


def _rnn_fc_kernel(x_ref, w_ih_ref, w_hh_ref, b_ref, w_fc_ref, b_fc_ref,
                   out_ref, pre_sc):
    """One batch tile: full recurrence + final linear layer.

    x_ref    : (T*BT, Ip)  time-major, flattened input for this batch tile
               (row t*BT + b  ==  x[t, b_tile + b, :])
    w_ih_ref : (Ip, Hp)    W_ih^T  (zero padded)
    w_hh_ref : (Hp, Hp)    W_hh^T  (zero padded)
    b_ref    : (1,  Hp)    b_ih + b_hh (zero padded)
    w_fc_ref : (Hp, Op)    W_fc^T  (zero padded)
    b_fc_ref : (1,  Op)    b_fc    (zero padded)
    out_ref  : (BT, Op)
    pre_sc   : (T*BT, Hp)  VMEM scratch: hoisted input projection (+ RNN bias)
    """
    BT = out_ref.shape[0]
    T = x_ref.shape[0] // BT
    Hp = w_hh_ref.shape[1]

    # (1) Hoisted input projection + bias for ALL timesteps: a single matmul with no
    #     serial dependence; it sits entirely off the recurrence's critical path.
    pre_sc[...] = (jnp.dot(x_ref[...], w_ih_ref[...],
                           preferred_element_type=jnp.float32)
                   + b_ref[...])

    # (2) Hoist the recurrent weight load; carry h in vregs (no VMEM round-trip).
    w_hh = w_hh_ref[...]
    h0 = jnp.zeros((BT, Hp), jnp.float32)

    def step(t, h):
        start = pl.multiple_of(t * BT, 8)
        pre_t = pre_sc[pl.ds(start, BT), :]          # load only; not on the serial chain
        return jnp.tanh(jnp.dot(h, w_hh, preferred_element_type=jnp.float32)
                        + pre_t)

    # (3) Unroll the fixed-T loop so the scheduler sees across iterations.
    unroll = True if T <= 128 else 8
    h_last = lax.fori_loop(0, T, step, h0, unroll=unroll)

    # (4) Final linear layer, once per call.
    out_ref[...] = (jnp.dot(h_last, w_fc_ref[...],
                            preferred_element_type=jnp.float32)
                    + b_fc_ref[...])


def _forward_impl(x, params):
    """x: (B, T, input_size) float32.  Returns (B, output_size) float32 logits."""
    w_ih, w_hh, b_ih, b_hh, w_fc, b_fc = (
        params["w_ih"], params["w_hh"], params["b_ih"],
        params["b_hh"], params["w_fc"], params["b_fc"])

    B, T, I = x.shape
    H = w_ih.shape[0]
    O = w_fc.shape[0]

    # Hardware-friendly padded sizes.
    Ip = _round_up(max(I, 1), 8)        # input feature dim: pad to 8, NOT 128
    Hp = _round_up(H, 128)              # hidden dim -> lane-aligned
    Op = _round_up(O, 128)              # lane-dense output slab

    B8 = _round_up(max(B, 1), 8)        # sublane-aligned batch
    BT = min(B8, 256)                   # per-grid-step batch tile (big tiles feed the MXU)
    nbt = pl.cdiv(B8, BT)               # batch tiles; "parallel" -> v7x 2-TC sharding
    Bp = nbt * BT

    # Time-major, zero-padded input: (T, Bp, Ip), then flattened per batch tile to
    # (nbt * T * BT, Ip) so the kernel can do one 2-D projection matmul per tile.
    x_tm = jnp.transpose(x.astype(jnp.float32), (1, 0, 2))          # (T, B, I)
    x_p = jnp.zeros((T, Bp, Ip), jnp.float32).at[:, :B, :I].set(x_tm)
    x_flat = (x_p.reshape(T, nbt, BT, Ip)
                 .transpose(1, 0, 2, 3)
                 .reshape(nbt * T * BT, Ip))

    # Pre-transposed, zero-padded weights (padding is all-zero -> math unchanged).
    w_ih_t = jnp.zeros((Ip, Hp), jnp.float32).at[:I, :H].set(w_ih.T)
    w_hh_t = jnp.zeros((Hp, Hp), jnp.float32).at[:H, :H].set(w_hh.T)
    b_rnn = jnp.zeros((1, Hp), jnp.float32).at[0, :H].set(b_ih + b_hh)
    w_fc_t = jnp.zeros((Hp, Op), jnp.float32).at[:H, :O].set(w_fc.T)
    b_fc_p = jnp.zeros((1, Op), jnp.float32).at[0, :O].set(b_fc)

    out_p = pl.pallas_call(
        _rnn_fc_kernel,
        out_shape=jax.ShapeDtypeStruct((Bp, Op), jnp.float32),
        grid=(nbt,),
        in_specs=[
            pl.BlockSpec((T * BT, Ip), lambda i: (i, 0)),   # x: per-batch-tile slab
            pl.BlockSpec((Ip, Hp), lambda i: (0, 0)),       # W_ih^T (shared)
            pl.BlockSpec((Hp, Hp), lambda i: (0, 0)),       # W_hh^T (shared)
            pl.BlockSpec((1, Hp), lambda i: (0, 0)),        # b_ih + b_hh
            pl.BlockSpec((Hp, Op), lambda i: (0, 0)),       # W_fc^T
            pl.BlockSpec((1, Op), lambda i: (0, 0)),        # b_fc
        ],
        out_specs=pl.BlockSpec((BT, Op), lambda i: (i, 0)),
        scratch_shapes=[pltpu.VMEM((T * BT, Hp), jnp.float32)],
        compiler_params=pltpu.CompilerParams(
            dimension_semantics=("parallel",)),
    )(x_flat, w_ih_t, w_hh_t, b_rnn, w_fc_t, b_fc_p)

    return out_p[:B, :O]


# jit so the wrapper's pad/transpose fuse instead of dominating end-to-end time.
binary_classification_rnn = jax.jit(_forward_impl)


def _reference_forward(x, params):
    """Pure-JAX reference of the PyTorch forward (for verification)."""
    w_ih, w_hh, b_ih, b_hh, w_fc, b_fc = (
        params["w_ih"], params["w_hh"], params["b_ih"],
        params["b_hh"], params["w_fc"], params["b_fc"])
    B, T, _ = x.shape
    h = jnp.zeros((B, w_ih.shape[0]), jnp.float32)
    for t in range(T):
        h = jnp.tanh(x[:, t, :] @ w_ih.T + b_ih + h @ w_hh.T + b_hh)
    return h @ w_fc.T + b_fc


def init_params(key, input_size=INPUT_SIZE, hidden_size=HIDDEN_SIZE,
                output_size=OUTPUT_SIZE):
    """Deterministic init mimicking PyTorch's U(-1/sqrt(H), 1/sqrt(H))."""
    ks = jax.random.split(key, 6)
    s_rnn = 1.0 / jnp.sqrt(hidden_size)
    s_fc = 1.0 / jnp.sqrt(hidden_size)
    return {
        "w_ih": jax.random.uniform(ks[0], (hidden_size, input_size),
                                   jnp.float32, -s_rnn, s_rnn),
        "w_hh": jax.random.uniform(ks[1], (hidden_size, hidden_size),
                                   jnp.float32, -s_rnn, s_rnn),
        "b_ih": jax.random.uniform(ks[2], (hidden_size,),
                                   jnp.float32, -s_rnn, s_rnn),
        "b_hh": jax.random.uniform(ks[3], (hidden_size,),
                                   jnp.float32, -s_rnn, s_rnn),
        "w_fc": jax.random.uniform(ks[4], (output_size, hidden_size),
                                   jnp.float32, -s_fc, s_fc),
        "b_fc": jax.random.uniform(ks[5], (output_size,),
                                   jnp.float32, -s_fc, s_fc),
    }


if __name__ == "__main__":
    key = jax.random.PRNGKey(0)
    k_param, k_x = jax.random.split(key)

    B, T = 2, 8
    params = init_params(k_param)
    x = jax.random.normal(k_x, (B, T, INPUT_SIZE), jnp.float32)

    out = binary_classification_rnn(x, params)
    out = jax.block_until_ready(out)

    ref = _reference_forward(x, params)
    assert out.shape == (B, OUTPUT_SIZE), out.shape
    assert jnp.allclose(out, ref, atol=1e-5, rtol=1e-5), (out, ref)

    print("KERNEL_OK")
</pallas_src>

<mosaic_0001>
module attributes {stable_mosaic.version = 11 : i64} {
  func.func @_rnn_fc_kernel(%arg0: i32, %arg1: memref<64x8xf32, #tpu.memory_space<vmem>>, %arg2: memref<8x128xf32, #tpu.memory_space<vmem>>, %arg3: memref<128x128xf32, #tpu.memory_space<vmem>>, %arg4: memref<1x128xf32, #tpu.memory_space<vmem>>, %arg5: memref<128x128xf32, #tpu.memory_space<vmem>>, %arg6: memref<1x128xf32, #tpu.memory_space<vmem>>, %arg7: memref<8x128xf32, #tpu.memory_space<vmem>>, %arg8: memref<64x128xf32, #tpu.memory_space<vmem>>) attributes {dimension_semantics = [#tpu.dimension_semantics<parallel>], iteration_bounds = array<i64: 1>, scalar_prefetch = 0 : i64, scratch_operands = 1 : i64, tpu.core_type = #tpu.core_type<tc>, window_params = [{transform_indices = @transform_0, window_bounds = array<i64: 64, 8>}, {pipeline_mode = #tpu.pipeline_mode<synchronous>, transform_indices = @transform_1, window_bounds = array<i64: 8, 128>}, {pipeline_mode = #tpu.pipeline_mode<synchronous>, transform_indices = @transform_2, window_bounds = array<i64: 128, 128>}, {pipeline_mode = #tpu.pipeline_mode<synchronous>, transform_indices = @transform_3, window_bounds = array<i64: 1, 128>}, {pipeline_mode = #tpu.pipeline_mode<synchronous>, transform_indices = @transform_4, window_bounds = array<i64: 128, 128>}, {pipeline_mode = #tpu.pipeline_mode<synchronous>, transform_indices = @transform_5, window_bounds = array<i64: 1, 128>}, {transform_indices = @transform_6, window_bounds = array<i64: 8, 128>}]} {
    %c0 = arith.constant 0 : index
    %c0_0 = arith.constant 0 : index
    %0 = vector.load %arg1[%c0, %c0_0] : memref<64x8xf32, #tpu.memory_space<vmem>>, vector<64x8xf32>
    %c0_1 = arith.constant 0 : index
    %c0_2 = arith.constant 0 : index
    %1 = vector.load %arg2[%c0_1, %c0_2] : memref<8x128xf32, #tpu.memory_space<vmem>>, vector<8x128xf32>
    %cst = arith.constant dense<0.000000e+00> : vector<64x128xf32>
    %2 = tpu.matmul %0, %1, %cst {dimension_numbers = #tpu.dot_dimension_numbers<[1], [0], [0], [1], [0, 0, 1, 1], [], []>} : vector<64x8xf32>, vector<8x128xf32>, vector<64x128xf32> -> vector<64x128xf32>
    %c0_3 = arith.constant 0 : index
    %c0_4 = arith.constant 0 : index
    %3 = vector.load %arg4[%c0_3, %c0_4] : memref<1x128xf32, #tpu.memory_space<vmem>>, vector<1x128xf32>
    %4 = vector.broadcast %3 : vector<1x128xf32> to vector<64x128xf32>
    %5 = arith.addf %2, %4 : vector<64x128xf32>
    %c0_5 = arith.constant 0 : index
    %c0_6 = arith.constant 0 : index
    %6 = vector.load %arg8[%c0_5, %c0_6] : memref<64x128xf32, #tpu.memory_space<vmem>>, vector<64x128xf32>
    tpu.vector_store %arg8[%c0_5, %c0_6], %5 {strides = array<i32>} : memref<64x128xf32, #tpu.memory_space<vmem>>, vector<64x128xf32>,
    %c0_7 = arith.constant 0 : index
    %c0_8 = arith.constant 0 : index
    %7 = vector.load %arg3[%c0_7, %c0_8] : memref<128x128xf32, #tpu.memory_space<vmem>>, vector<128x128xf32>
    %cst_9 = arith.constant 0.000000e+00 : f32
    %8 = vector.broadcast %cst_9 : f32 to vector<8x128xf32>
    %c0_i32 = arith.constant 0 : i32
    %c8_i32 = arith.constant 8 : i32
    %9 = arith.muli %c0_i32, %c8_i32 : i32
    %10 = tpu.assume_multiple %9, 8 : i32
    %11 = arith.index_cast %10 : i32 to index
    %c0_10 = arith.constant 0 : index
    %12 = vector.load %arg8[%11, %c0_10] : memref<64x128xf32, #tpu.memory_space<vmem>>, vector<8x128xf32>
    %cst_11 = arith.constant dense<0.000000e+00> : vector<8x128xf32>
    %13 = tpu.matmul %8, %7, %cst_11 {dimension_numbers = #tpu.dot_dimension_numbers<[1], [0], [0], [1], [0, 0, 1, 1], [], []>} : vector<8x128xf32>, vector<128x128xf32>, vector<8x128xf32> -> vector<8x128xf32>
    %14 = arith.addf %13, %12 : vector<8x128xf32>
    %15 = math.tanh %14 : vector<8x128xf32>
    %c1_i32 = arith.constant 1 : i32
    %c8_i32_12 = arith.constant 8 : i32
    %16 = arith.muli %c1_i32, %c8_i32_12 : i32
    %17 = tpu.assume_multiple %16, 8 : i32
    %18 = arith.index_cast %17 : i32 to index
    %c0_13 = arith.constant 0 : index
    %19 = vector.load %arg8[%18, %c0_13] : memref<64x128xf32, #tpu.memory_space<vmem>>, vector<8x128xf32>
    %cst_14 = arith.constant dense<0.000000e+00> : vector<8x128xf32>
    %20 = tpu.matmul %15, %7, %cst_14 {dimension_numbers = #tpu.dot_dimension_numbers<[1], [0], [0], [1], [0, 0, 1, 1], [], []>} : vector<8x128xf32>, vector<128x128xf32>, vector<8x128xf32> -> vector<8x128xf32>
    %21 = arith.addf %20, %19 : vector<8x128xf32>
    %22 = math.tanh %21 : vector<8x128xf32>
    %c2_i32 = arith.constant 2 : i32
    %c8_i32_15 = arith.constant 8 : i32
    %23 = arith.muli %c2_i32, %c8_i32_15 : i32
    %24 = tpu.assume_multiple %23, 8 : i32
    %25 = arith.index_cast %24 : i32 to index
    %c0_16 = arith.constant 0 : index
    %26 = vector.load %arg8[%25, %c0_16] : memref<64x128xf32, #tpu.memory_space<vmem>>, vector<8x128xf32>
    %cst_17 = arith.constant dense<0.000000e+00> : vector<8x128xf32>
    %27 = tpu.matmul %22, %7, %cst_17 {dimension_numbers = #tpu.dot_dimension_numbers<[1], [0], [0], [1], [0, 0, 1, 1], [], []>} : vector<8x128xf32>, vector<128x128xf32>, vector<8x128xf32> -> vector<8x128xf32>
    %28 = arith.addf %27, %26 : vector<8x128xf32>
    %29 = math.tanh %28 : vector<8x128xf32>
    %c3_i32 = arith.constant 3 : i32
    %c8_i32_18 = arith.constant 8 : i32
    %30 = arith.muli %c3_i32, %c8_i32_18 : i32
    %31 = tpu.assume_multiple %30, 8 : i32
    %32 = arith.index_cast %31 : i32 to index
    %c0_19 = arith.constant 0 : index
    %33 = vector.load %arg8[%32, %c0_19] : memref<64x128xf32, #tpu.memory_space<vmem>>, vector<8x128xf32>
    %cst_20 = arith.constant dense<0.000000e+00> : vector<8x128xf32>
    %34 = tpu.matmul %29, %7, %cst_20 {dimension_numbers = #tpu.dot_dimension_numbers<[1], [0], [0], [1], [0, 0, 1, 1], [], []>} : vector<8x128xf32>, vector<128x128xf32>, vector<8x128xf32> -> vector<8x128xf32>
    %35 = arith.addf %34, %33 : vector<8x128xf32>
    %36 = math.tanh %35 : vector<8x128xf32>
    %c4_i32 = arith.constant 4 : i32
    %c8_i32_21 = arith.constant 8 : i32
    %37 = arith.muli %c4_i32, %c8_i32_21 : i32
    %38 = tpu.assume_multiple %37, 8 : i32
    %39 = arith.index_cast %38 : i32 to index
    %c0_22 = arith.constant 0 : index
    %40 = vector.load %arg8[%39, %c0_22] : memref<64x128xf32, #tpu.memory_space<vmem>>, vector<8x128xf32>
    %cst_23 = arith.constant dense<0.000000e+00> : vector<8x128xf32>
    %41 = tpu.matmul %36, %7, %cst_23 {dimension_numbers = #tpu.dot_dimension_numbers<[1], [0], [0], [1], [0, 0, 1, 1], [], []>} : vector<8x128xf32>, vector<128x128xf32>, vector<8x128xf32> -> vector<8x128xf32>
    %42 = arith.addf %41, %40 : vector<8x128xf32>
    %43 = math.tanh %42 : vector<8x128xf32>
    %c5_i32 = arith.constant 5 : i32
    %c8_i32_24 = arith.constant 8 : i32
    %44 = arith.muli %c5_i32, %c8_i32_24 : i32
    %45 = tpu.assume_multiple %44, 8 : i32
    %46 = arith.index_cast %45 : i32 to index
    %c0_25 = arith.constant 0 : index
    %47 = vector.load %arg8[%46, %c0_25] : memref<64x128xf32, #tpu.memory_space<vmem>>, vector<8x128xf32>
    %cst_26 = arith.constant dense<0.000000e+00> : vector<8x128xf32>
    %48 = tpu.matmul %43, %7, %cst_26 {dimension_numbers = #tpu.dot_dimension_numbers<[1], [0], [0], [1], [0, 0, 1, 1], [], []>} : vector<8x128xf32>, vector<128x128xf32>, vector<8x128xf32> -> vector<8x128xf32>
    %49 = arith.addf %48, %47 : vector<8x128xf32>
    %50 = math.tanh %49 : vector<8x128xf32>
    %c6_i32 = arith.constant 6 : i32
    %c8_i32_27 = arith.constant 8 : i32
    %51 = arith.muli %c6_i32, %c8_i32_27 : i32
    %52 = tpu.assume_multiple %51, 8 : i32
    %53 = arith.index_cast %52 : i32 to index
    %c0_28 = arith.constant 0 : index
    %54 = vector.load %arg8[%53, %c0_28] : memref<64x128xf32, #tpu.memory_space<vmem>>, vector<8x128xf32>
    %cst_29 = arith.constant dense<0.000000e+00> : vector<8x128xf32>
    %55 = tpu.matmul %50, %7, %cst_29 {dimension_numbers = #tpu.dot_dimension_numbers<[1], [0], [0], [1], [0, 0, 1, 1], [], []>} : vector<8x128xf32>, vector<128x128xf32>, vector<8x128xf32> -> vector<8x128xf32>
    %56 = arith.addf %55, %54 : vector<8x128xf32>
    %57 = math.tanh %56 : vector<8x128xf32>
    %c7_i32 = arith.constant 7 : i32
    %c8_i32_30 = arith.constant 8 : i32
    %58 = arith.muli %c7_i32, %c8_i32_30 : i32
    %59 = tpu.assume_multiple %58, 8 : i32
    %60 = arith.index_cast %59 : i32 to index
    %c0_31 = arith.constant 0 : index
    %61 = vector.load %arg8[%60, %c0_31] : memref<64x128xf32, #tpu.memory_space<vmem>>, vector<8x128xf32>
    %cst_32 = arith.constant dense<0.000000e+00> : vector<8x128xf32>
    %62 = tpu.matmul %57, %7, %cst_32 {dimension_numbers = #tpu.dot_dimension_numbers<[1], [0], [0], [1], [0, 0, 1, 1], [], []>} : vector<8x128xf32>, vector<128x128xf32>, vector<8x128xf32> -> vector<8x128xf32>
    %63 = arith.addf %62, %61 : vector<8x128xf32>
    %64 = math.tanh %63 : vector<8x128xf32>
    %c8_i32_33 = arith.constant 8 : i32
    %c0_34 = arith.constant 0 : index
    %c0_35 = arith.constant 0 : index
    %65 = vector.load %arg5[%c0_34, %c0_35] : memref<128x128xf32, #tpu.memory_space<vmem>>, vector<128x128xf32>
    %cst_36 = arith.constant dense<0.000000e+00> : vector<8x128xf32>
    %66 = tpu.matmul %64, %65, %cst_36 {dimension_numbers = #tpu.dot_dimension_numbers<[1], [0], [0], [1], [0, 0, 1, 1], [], []>} : vector<8x128xf32>, vector<128x128xf32>, vector<8x128xf32> -> vector<8x128xf32>
    %c0_37 = arith.constant 0 : index
    %c0_38 = arith.constant 0 : index
    %67 = vector.load %arg6[%c0_37, %c0_38] : memref<1x128xf32, #tpu.memory_space<vmem>>, vector<1x128xf32>
    %68 = vector.broadcast %67 : vector<1x128xf32> to vector<8x128xf32>
    %69 = arith.addf %66, %68 : vector<8x128xf32>
    %c0_39 = arith.constant 0 : index
    %c0_40 = arith.constant 0 : index
    %70 = vector.load %arg7[%c0_39, %c0_40] : memref<8x128xf32, #tpu.memory_space<vmem>>, vector<8x128xf32>
    tpu.vector_store %arg7[%c0_39, %c0_40], %69 {strides = array<i32>} : memref<8x128xf32, #tpu.memory_space<vmem>>, vector<8x128xf32>,
    return
  }
  func.func @transform_0(%arg0: i32) -> (i32, i32) {
    %c0_i32 = arith.constant 0 : i32
    %c0_i32_0 = arith.constant 0 : i32
    return %arg0, %c0_i32 : i32, i32
  }
  func.func @transform_1(%arg0: i32) -> (i32, i32) {
    %c0_i32 = arith.constant 0 : i32
    %c0_i32_0 = arith.constant 0 : i32
    %c0_i32_1 = arith.constant 0 : i32
    return %c0_i32, %c0_i32_0 : i32, i32
  }
  func.func @transform_2(%arg0: i32) -> (i32, i32) {
    %c0_i32 = arith.constant 0 : i32
    %c0_i32_0 = arith.constant 0 : i32
    %c0_i32_1 = arith.constant 0 : i32
    return %c0_i32, %c0_i32_0 : i32, i32
  }
  func.func @transform_3(%arg0: i32) -> (i32, i32) {
    %c0_i32 = arith.constant 0 : i32
    %c0_i32_0 = arith.constant 0 : i32
    %c0_i32_1 = arith.constant 0 : i32
    return %c0_i32, %c0_i32_0 : i32, i32
  }
  func.func @transform_4(%arg0: i32) -> (i32, i32) {
    %c0_i32 = arith.constant 0 : i32
    %c0_i32_0 = arith.constant 0 : i32
    %c0_i32_1 = arith.constant 0 : i32
    return %c0_i32, %c0_i32_0 : i32, i32
  }
  func.func @transform_5(%arg0: i32) -> (i32, i32) {
    %c0_i32 = arith.constant 0 : i32
    %c0_i32_0 = arith.constant 0 : i32
    %c0_i32_1 = arith.constant 0 : i32
    return %c0_i32, %c0_i32_0 : i32, i32
  }
  func.func @transform_6(%arg0: i32) -> (i32, i32) {
    %c0_i32 = arith.constant 0 : i32
    %c0_i32_0 = arith.constant 0 : i32
    return %arg0, %c0_i32 : i32, i32
  }
}

</mosaic_0001>

<llo_original>
// kernel: _forward_impl.1
$region0: #{_forward_impl.1}
  #allocation0 [shape = 'u32[]', space=smem, size = 0x4, offset = 0x4, fixed_abs, tag = 'smem constant byte address 0x4 - core index']
  #allocation1 [shape = 'u32[144,128]{1,0:T(1,128)}', space=vmem, size = 0x12000, scoped, tag = 'internal scratch']
  #allocation2 [shape = 'f32[64,128]{1,0:T(8,128)}', space=vmem, size = 0x8000, scoped, tag = 'scratch operand']
  %s0 = inlined_call_operand.vmem [shape: f32[64,8], index: 0, kind: input, shape index: {}]
  %s1 = inlined_call_operand.vmem [shape: f32[8,128], index: 1, kind: input, shape index: {}]
  %s2 = inlined_call_operand.vmem [shape: f32[128,128], index: 2, kind: input, shape index: {}]
  %s3 = inlined_call_operand.vmem [shape: f32[1,128], index: 3, kind: input, shape index: {}]
  %s4 = inlined_call_operand.vmem [shape: f32[128,128], index: 4, kind: input, shape index: {}]
  %s5 = inlined_call_operand.vmem [shape: f32[1,128], index: 5, kind: input, shape index: {}]
  %s6 = inlined_call_operand.vmem [shape: f32[8,128], index: 6, kind: output, shape index: {}]
  %s7 = sld [smem:[#allocation0]]
  $region34: #{_forward_impl.1} parent=0
    _
  %s9 = ssub.s32 1, %s7
  %s10 = scalar_select 0, %s9, %s7
  // Predicated region
  $region2: #{_forward_impl.1} parent=0 // pred_check
    _
  $region3: #{_forward_impl.1} parent=0 // pred_check_branch
    %12 = sbr.rel (0) target = $region5
  $region4: #{_forward_impl.1} parent=0 // pred_region
    _
  $region5: #{_forward_impl.1} parent=0 // pred_fallthru
    _
  // Predicated region
  $region6: #{_forward_impl.1} parent=0 // pred_check
    _
  $region7: #{_forward_impl.1} parent=0 // pred_check_branch
    %14 = sbr.rel (0) target = $region9
  $region8: #{_forward_impl.1} parent=0 // pred_region
    _
  $region9: #{_forward_impl.1} parent=0 // pred_fallthru
    _
  // Predicated region
  $region10: #{_forward_impl.1} parent=0 // pred_check
    _
  $region11: #{_forward_impl.1} parent=0 // pred_check_branch
    %16 = sbr.rel (0) target = $region13
  $region12: #{_forward_impl.1} parent=0 // pred_region
    _
  $region13: #{_forward_impl.1} parent=0 // pred_fallthru
    _
  // Predicated region
  $region14: #{_forward_impl.1} parent=0 // pred_check
    _
  $region15: #{_forward_impl.1} parent=0 // pred_check_branch
    %18 = sbr.rel (0) target = $region17
  $region16: #{_forward_impl.1} parent=0 // pred_region
    _
  $region17: #{_forward_impl.1} parent=0 // pred_fallthru
    _
  // Predicated region
  $region18: #{_forward_impl.1} parent=0 // pred_check
    _
  $region19: #{_forward_impl.1} parent=0 // pred_check_branch
    %20 = sbr.rel (0) target = $region21
  $region20: #{_forward_impl.1} parent=0 // pred_region
    _
  $region21: #{_forward_impl.1} parent=0 // pred_fallthru
    _
  // Predicated region
  $region22: #{_forward_impl.1} parent=0 // pred_check
    _
  $region23: #{_forward_impl.1} parent=0 // pred_check_branch
    %22 = sbr.rel (0) target = $region25
  $region24: #{_forward_impl.1} parent=0 // pred_region
    _
  $region25: #{_forward_impl.1} parent=0 // pred_fallthru
    _
  %v23 = vld [vmem:[%s0] sm:$0xff]
  %v24 = vld [vmem:[%s0 + $0x8] sm:$0xff]
  %v25 = vld [vmem:[%s0 + $0x10] sm:$0xff]
  %v26 = vld [vmem:[%s0 + $0x18] sm:$0xff]
  %v27 = vld [vmem:[%s0 + $0x20] sm:$0xff]
  %v28 = vld [vmem:[%s0 + $0x28] sm:$0xff]
  %v29 = vld [vmem:[%s0 + $0x30] sm:$0xff]
  %v30 = vld [vmem:[%s0 + $0x38] sm:$0xff]
  %v31 = vld [vmem:[%s1] sm:$0xff]
  %v32 = vld [vmem:[%s3] sm:$0x1]
  %v34 = vlaneseq
  %v35 = vshrl.u32 %v34, 7
  %v36 = vsub.s32 0, %v35
  %v37 = vrot.slane %v32, %v36
  %vm39 = vcmask 64512
  %v41 = vsel %vm39, %v23, 0
  %v44 = vsel %vm39, %v24, 0
  %v47 = vsel %vm39, %v25, 0
  %v50 = vsel %vm39, %v26, 0
  %v53 = vsel %vm39, %v27, 0
  %v56 = vsel %vm39, %v28, 0
  %v59 = vsel %vm39, %v29, 0
  %v62 = vsel %vm39, %v30, 0
  %64 = vmatprep.subr.mxu0 0.0
  %65 = vmatpush1.msra.mxu0 %v31
  %66 = vmatprep.subr.mxu0 0.0
  %67 = vmatpush1.msra.mxu0 0.0
  %68 = vmatprep.subr.mxu0 0.0
  %69 = vmatpush1.msra.mxu0 0.0
  %70 = vmatprep.subr.mxu0 0.0
  %71 = vmatpush1.msra.mxu0 0.0
  %72 = vmatprep.subr.mxu0 0.0
  %73 = vmatpush1.msra.mxu0 0.0
  %74 = vmatprep.subr.mxu0 0.0
  %75 = vmatpush1.msra.mxu0 0.0
  %76 = vmatprep.subr.mxu0 0.0
  %77 = vmatpush1.msra.mxu0 0.0
  %78 = vmatprep.subr.mxu0 0.0
  %79 = vmatpush1.msra.mxu0 0.0
  %80 = vmatprep.subr.mxu0 0.0
  %81 = vmatpush1.msra.mxu0 0.0
  %82 = vmatprep.subr.mxu0 0.0
  %83 = vmatpush1.msra.mxu0 0.0
  %84 = vmatprep.subr.mxu0 0.0
  %85 = vmatpush1.msra.mxu0 0.0
  %86 = vmatprep.subr.mxu0 0.0
  %87 = vmatpush1.msra.mxu0 0.0
  %88 = vmatprep.subr.mxu0 0.0
  %89 = vmatpush1.msra.mxu0 0.0
  %90 = vmatprep.subr.mxu0 0.0
  %91 = vmatpush1.msra.mxu0 0.0
  %92 = vmatprep.subr.mxu0 0.0
  %93 = vmatpush1.msra.mxu0 0.0
  %94 = vmatprep.subr.mxu0 0.0
  %95 = vmatpush1.msra.mxu0 0.0
  %96 = vmatprep.subr.mxu0 0.0
  %97 = vmatpush1.msra.mxu0 0.0
  %98 = vmatprep.subr.mxu0 0.0
  %99 = vmatpush1.msra.mxu0 0.0
  %100 = vmatprep.subr.mxu0 0.0
  %101 = vmatpush1.msra.mxu0 0.0
  %102 = vmatprep.subr.mxu0 0.0
  %103 = vmatpush1.msra.mxu0 0.0
  %104 = vmatprep.subr.mxu0 0.0
  %105 = vmatpush1.msra.mxu0 0.0
  %106 = vmatprep.subr.mxu0 0.0
  %107 = vmatpush1.msra.mxu0 0.0
  %108 = vmatprep.subr.mxu0 0.0
  %109 = vmatpush1.msra.mxu0 0.0
  %110 = vmatprep.subr.mxu0 0.0
  %111 = vmatpush1.msra.mxu0 0.0
  %112 = vmatprep.subr.mxu0 0.0
  %113 = vmatpush1.msra.mxu0 0.0
  %114 = vmatprep.subr.mxu0 0.0
  %115 = vmatpush1.msra.mxu0 0.0
  %116 = vmatprep.subr.mxu0 0.0
  %117 = vmatpush1.msra.mxu0 0.0
  %118 = vmatprep.subr.mxu0 0.0
  %119 = vmatpush1.msra.mxu0 0.0
  %120 = vmatprep.subr.mxu0 0.0
  %121 = vmatpush1.msra.mxu0 0.0
  %122 = vmatprep.subr.mxu0 0.0
  %123 = vmatpush1.msra.mxu0 0.0
  %124 = vmatprep.subr.mxu0 0.0
  %125 = vmatpush1.msra.mxu0 0.0
  %126 = vmatprep.subr.mxu0 0.0
  %127 = vmatpush1.msra.mxu0 0.0
  %128 = vmatprep.mubr.f32.mxu0 0.0
  %129 = vmatmul.mubr.f32.gmra.mrb[0].mxu0 %v41
  %v130 = vpop.f32.mrb[0].mxu0
  %v131 = vadd.f32 %v37, %v130
  %v132 = vpop.f32.mrb[0].mxu0
  %133 = vmatprep.mubr.f32.mxu0 0.0
  %134 = vmatmul.mubr.f32.gmra.mrb[0].mxu0 %v44
  %v135 = vpop.f32.mrb[0].mxu0
  %v136 = vadd.f32 %v37, %v135
  %v137 = vpop.f32.mrb[0].mxu0
  %138 = vmatprep.mubr.f32.mxu0 0.0
  %139 = vmatmul.mubr.f32.gmra.mrb[0].mxu0 %v47
  %v140 = vpop.f32.mrb[0].mxu0
  %v141 = vadd.f32 %v37, %v140
  %v142 = vpop.f32.mrb[0].mxu0
  %143 = vmatprep.mubr.f32.mxu0 0.0
  %144 = vmatmul.mubr.f32.gmra.mrb[0].mxu0 %v50
  %v145 = vpop.f32.mrb[0].mxu0
  %v146 = vadd.f32 %v37, %v145
  %v147 = vpop.f32.mrb[0].mxu0
  %148 = vmatprep.mubr.f32.mxu0 0.0
  %149 = vmatmul.mubr.f32.gmra.mrb[0].mxu0 %v53
  %v150 = vpop.f32.mrb[0].mxu0
  %v151 = vadd.f32 %v37, %v150
  %v152 = vpop.f32.mrb[0].mxu0
  %153 = vmatprep.mubr.f32.mxu0 0.0
  %154 = vmatmul.mubr.f32.gmra.mrb[0].mxu0 %v56
  %v155 = vpop.f32.mrb[0].mxu0
  %v156 = vadd.f32 %v37, %v155
  %v157 = vpop.f32.mrb[0].mxu0
  %158 = vmatprep.mubr.f32.mxu0 0.0
  %159 = vmatmul.mubr.f32.gmra.mrb[0].mxu0 %v59
  %v160 = vpop.f32.mrb[0].mxu0
  %v161 = vadd.f32 %v37, %v160
  %v162 = vpop.f32.mrb[0].mxu0
  %163 = vmatprep.mubr.f32.mxu0 0.0
  %164 = vmatmul.mubr.f32.gmra.mrb[0].mxu0 %v62
  %v165 = vpop.f32.mrb[0].mxu0
  %v166 = vadd.f32 %v37, %v165
  %v167 = vpop.f32.mrb[0].mxu0
  %168 = vdwg.mxu0
  %169 = vst [vmem:[#allocation2] sm:$0xff] %v131
  %170 = vst [vmem:[#allocation2 + $0x8] sm:$0xff] %v136
  %171 = vst [vmem:[#allocation2 + $0x10] sm:$0xff] %v141
  %172 = vst [vmem:[#allocation2 + $0x18] sm:$0xff] %v146
  %173 = vst [vmem:[#allocation2 + $0x20] sm:$0xff] %v151
  %174 = vst [vmem:[#allocation2 + $0x28] sm:$0xff] %v156
  %175 = vst [vmem:[#allocation2 + $0x30] sm:$0xff] %v161
  %176 = vst [vmem:[#allocation2 + $0x38] sm:$0xff] %v166
  %v177 = vld [vmem:[%s2] sm:$0xff]
  %v178 = vld [vmem:[%s2 + $0x8] sm:$0xff]
  %v179 = vld [vmem:[%s2 + $0x10] sm:$0xff]
  %v180 = vld [vmem:[%s2 + $0x18] sm:$0xff]
  %v181 = vld [vmem:[%s2 + $0x20] sm:$0xff]
  %v182 = vld [vmem:[%s2 + $0x28] sm:$0xff]
  %v183 = vld [vmem:[%s2 + $0x30] sm:$0xff]
  %v184 = vld [vmem:[%s2 + $0x38] sm:$0xff]
  %v185 = vld [vmem:[%s2 + $0x40] sm:$0xff]
  %v186 = vld [vmem:[%s2 + $0x48] sm:$0xff]
  %v187 = vld [vmem:[%s2 + $0x50] sm:$0xff]
  %v188 = vld [vmem:[%s2 + $0x58] sm:$0xff]
  %v189 = vld [vmem:[%s2 + $0x60] sm:$0xff]
  %v190 = vld [vmem:[%s2 + $0x68] sm:$0xff]
  %v191 = vld [vmem:[%s2 + $0x70] sm:$0xff]
  %v192 = vld [vmem:[%s2 + $0x78] sm:$0xff]
  %v193 = vld [vmem:[#allocation2] sm:$0xff]
  %194 = vmatprep.subr.mxu0 0.0
  %195 = vmatpush1.msra.mxu0 %v177
  %196 = vmatprep.subr.mxu0 0.0
  %197 = vmatpush1.msra.mxu0 %v178
  %198 = vmatprep.subr.mxu0 0.0
  %199 = vmatpush1.msra.mxu0 %v179
  %200 = vmatprep.subr.mxu0 0.0
  %201 = vmatpush1.msra.mxu0 %v180
  %202 = vmatprep.subr.mxu0 0.0
  %203 = vmatpush1.msra.mxu0 %v181
  %204 = vmatprep.subr.mxu0 0.0
  %205 = vmatpush1.msra.mxu0 %v182
  %206 = vmatprep.subr.mxu0 0.0
  %207 = vmatpush1.msra.mxu0 %v183
  %208 = vmatprep.subr.mxu0 0.0
  %209 = vmatpush1.msra.mxu0 %v184
  %210 = vmatprep.subr.mxu0 0.0
  %211 = vmatpush1.msra.mxu0 %v185
  %212 = vmatprep.subr.mxu0 0.0
  %213 = vmatpush1.msra.mxu0 %v186
  %214 = vmatprep.subr.mxu0 0.0
  %215 = vmatpush1.msra.mxu0 %v187
  %216 = vmatprep.subr.mxu0 0.0
  %217 = vmatpush1.msra.mxu0 %v188
  %218 = vmatprep.subr.mxu0 0.0
  %219 = vmatpush1.msra.mxu0 %v189
  %220 = vmatprep.subr.mxu0 0.0
  %221 = vmatpush1.msra.mxu0 %v190
  %222 = vmatprep.subr.mxu0 0.0
  %223 = vmatpush1.msra.mxu0 %v191
  %224 = vmatprep.subr.mxu0 0.0
  %225 = vmatpush1.msra.mxu0 %v192
  %226 = vmatprep.subr.mxu0 0.0
  %227 = vmatpush1.msra.mxu0 0.0
  %228 = vmatprep.subr.mxu0 0.0
  %229 = vmatpush1.msra.mxu0 0.0
  %230 = vmatprep.subr.mxu0 0.0
  %231 = vmatpush1.msra.mxu0 0.0
  %232 = vmatprep.subr.mxu0 0.0
  %233 = vmatpush1.msra.mxu0 0.0
  %234 = vmatprep.subr.mxu0 0.0
  %235 = vmatpush1.msra.mxu0 0.0
  %236 = vmatprep.subr.mxu0 0.0
  %237 = vmatpush1.msra.mxu0 0.0
  %238 = vmatprep.subr.mxu0 0.0
  %239 = vmatpush1.msra.mxu0 0.0
  %240 = vmatprep.subr.mxu0 0.0
  %241 = vmatpush1.msra.mxu0 0.0
  %242 = vmatprep.subr.mxu0 0.0
  %243 = vmatpush1.msra.mxu0 0.0
  %244 = vmatprep.subr.mxu0 0.0
  %245 = vmatpush1.msra.mxu0 0.0
  %246 = vmatprep.subr.mxu0 0.0
  %247 = vmatpush1.msra.mxu0 0.0
  %248 = vmatprep.subr.mxu0 0.0
  %249 = vmatpush1.msra.mxu0 0.0
  %250 = vmatprep.subr.mxu0 0.0
  %251 = vmatpush1.msra.mxu0 0.0
  %252 = vmatprep.subr.mxu0 0.0
  %253 = vmatpush1.msra.mxu0 0.0
  %254 = vmatprep.subr.mxu0 0.0
  %255 = vmatpush1.msra.mxu0 0.0
  %256 = vmatprep.subr.mxu0 0.0
  %257 = vmatpush1.msra.mxu0 0.0
  %258 = vmatprep.mubr.f32.mxu0 0.0
  %259 = vmatmul.mubr.f32.gmra.mrb[0].mxu0 0.0
  %v260 = vpop.f32.mrb[0].mxu0
  %v261 = vadd.f32 %v193, %v260
  %v262 = vpop.f32.mrb[0].mxu0
  %263 = vdwg.mxu0
  %v264 = vtanh.pop %v261
  %s265 = scalar_lea.vmem [#allocation2], 8
  %v266 = vld [vmem:[%s265] sm:$0xff]
  %267 = vmatprep.subr.mxu0 0.0
  %268 = vmatpush1.msra.mxu0 %v177
  %269 = vmatprep.subr.mxu0 0.0
  %270 = vmatpush1.msra.mxu0 %v178
  %271 = vmatprep.subr.mxu0 0.0
  %272 = vmatpush1.msra.mxu0 %v179
  %273 = vmatprep.subr.mxu0 0.0
  %274 = vmatpush1.msra.mxu0 %v180
  %275 = vmatprep.subr.mxu0 0.0
  %276 = vmatpush1.msra.mxu0 %v181
  %277 = vmatprep.subr.mxu0 0.0
  %278 = vmatpush1.msra.mxu0 %v182
  %279 = vmatprep.subr.mxu0 0.0
  %280 = vmatpush1.msra.mxu0 %v183
  %281 = vmatprep.subr.mxu0 0.0
  %282 = vmatpush1.msra.mxu0 %v184
  %283 = vmatprep.subr.mxu0 0.0
  %284 = vmatpush1.msra.mxu0 %v185
  %285 = vmatprep.subr.mxu0 0.0
  %286 = vmatpush1.msra.mxu0 %v186
  %287 = vmatprep.subr.mxu0 0.0
  %288 = vmatpush1.msra.mxu0 %v187
  %289 = vmatprep.subr.mxu0 0.0
  %290 = vmatpush1.msra.mxu0 %v188
  %291 = vmatprep.subr.mxu0 0.0
  %292 = vmatpush1.msra.mxu0 %v189
  %293 = vmatprep.subr.mxu0 0.0
  %294 = vmatpush1.msra.mxu0 %v190
  %295 = vmatprep.subr.mxu0 0.0
  %296 = vmatpush1.msra.mxu0 %v191
  %297 = vmatprep.subr.mxu0 0.0
  %298 = vmatpush1.msra.mxu0 %v192
  %299 = vmatprep.subr.mxu0 0.0
  %300 = vmatpush1.msra.mxu0 0.0
  %301 = vmatprep.subr.mxu0 0.0
  %302 = vmatpush1.msra.mxu0 0.0
  %303 = vmatprep.subr.mxu0 0.0
  %304 = vmatpush1.msra.mxu0 0.0
  %305 = vmatprep.subr.mxu0 0.0
  %306 = vmatpush1.msra.mxu0 0.0
  %307 = vmatprep.subr.mxu0 0.0
  %308 = vmatpush1.msra.mxu0 0.0
  %309 = vmatprep.subr.mxu0 0.0
  %310 = vmatpush1.msra.mxu0 0.0
  %311 = vmatprep.subr.mxu0 0.0
  %312 = vmatpush1.msra.mxu0 0.0
  %313 = vmatprep.subr.mxu0 0.0
  %314 = vmatpush1.msra.mxu0 0.0
  %315 = vmatprep.subr.mxu0 0.0
  %316 = vmatpush1.msra.mxu0 0.0
  %317 = vmatprep.subr.mxu0 0.0
  %318 = vmatpush1.msra.mxu0 0.0
  %319 = vmatprep.subr.mxu0 0.0
  %320 = vmatpush1.msra.mxu0 0.0
  %321 = vmatprep.subr.mxu0 0.0
  %322 = vmatpush1.msra.mxu0 0.0
  %323 = vmatprep.subr.mxu0 0.0
  %324 = vmatpush1.msra.mxu0 0.0
  %325 = vmatprep.subr.mxu0 0.0
  %326 = vmatpush1.msra.mxu0 0.0
  %327 = vmatprep.subr.mxu0 0.0
  %328 = vmatpush1.msra.mxu0 0.0
  %329 = vmatprep.subr.mxu0 0.0
  %330 = vmatpush1.msra.mxu0 0.0
  %331 = vmatprep.mubr.f32.mxu0 0.0
  %332 = vmatmul.mubr.f32.gmra.mrb[0].mxu0 %v264
  %v333 = vpop.f32.mrb[0].mxu0
  %v334 = vadd.f32 %v266, %v333
  %v335 = vpop.f32.mrb[0].mxu0
  %336 = vdwg.mxu0
  %v337 = vtanh.pop %v334
  %s338 = scalar_lea.vmem [#allocation2], 16
  %v339 = vld [vmem:[%s338] sm:$0xff]
  %340 = vmatprep.subr.mxu0 0.0
  %341 = vmatpush1.msra.mxu0 %v177
  %342 = vmatprep.subr.mxu0 0.0
  %343 = vmatpush1.msra.mxu0 %v178
  %344 = vmatprep.subr.mxu0 0.0
  %345 = vmatpush1.msra.mxu0 %v179
  %346 = vmatprep.subr.mxu0 0.0
  %347 = vmatpush1.msra.mxu0 %v180
  %348 = vmatprep.subr.mxu0 0.0
  %349 = vmatpush1.msra.mxu0 %v181
  %350 = vmatprep.subr.mxu0 0.0
  %351 = vmatpush1.msra.mxu0 %v182
  %352 = vmatprep.subr.mxu0 0.0
  %353 = vmatpush1.msra.mxu0 %v183
  %354 = vmatprep.subr.mxu0 0.0
  %355 = vmatpush1.msra.mxu0 %v184
  %356 = vmatprep.subr.mxu0 0.0
  %357 = vmatpush1.msra.mxu0 %v185
  %358 = vmatprep.subr.mxu0 0.0
  %359 = vmatpush1.msra.mxu0 %v186
  %360 = vmatprep.subr.mxu0 0.0
  %361 = vmatpush1.msra.mxu0 %v187
  %362 = vmatprep.subr.mxu0 0.0
  %363 = vmatpush1.msra.mxu0 %v188
  %364 = vmatprep.subr.mxu0 0.0
  %365 = vmatpush1.msra.mxu0 %v189
  %366 = vmatprep.subr.mxu0 0.0
  %367 = vmatpush1.msra.mxu0 %v190
  %368 = vmatprep.subr.mxu0 0.0
  %369 = vmatpush1.msra.mxu0 %v191
  %370 = vmatprep.subr.mxu0 0.0
  %371 = vmatpush1.msra.mxu0 %v192
  %372 = vmatprep.subr.mxu0 0.0
  %373 = vmatpush1.msra.mxu0 0.0
  %374 = vmatprep.subr.mxu0 0.0
  %375 = vmatpush1.msra.mxu0 0.0
  %376 = vmatprep.subr.mxu0 0.0
  %377 = vmatpush1.msra.mxu0 0.0
  %378 = vmatprep.subr.mxu0 0.0
  %379 = vmatpush1.msra.mxu0 0.0
  %380 = vmatprep.subr.mxu0 0.0
  %381 = vmatpush1.msra.mxu0 0.0
  %382 = vmatprep.subr.mxu0 0.0
  %383 = vmatpush1.msra.mxu0 0.0
  %384 = vmatprep.subr.mxu0 0.0
  %385 = vmatpush1.msra.mxu0 0.0
  %386 = vmatprep.subr.mxu0 0.0
  %387 = vmatpush1.msra.mxu0 0.0
  %388 = vmatprep.subr.mxu0 0.0
  %389 = vmatpush1.msra.mxu0 0.0
  %390 = vmatprep.subr.mxu0 0.0
  %391 = vmatpush1.msra.mxu0 0.0
  %392 = vmatprep.subr.mxu0 0.0
  %393 = vmatpush1.msra.mxu0 0.0
  %394 = vmatprep.subr.mxu0 0.0
  %395 = vmatpush1.msra.mxu0 0.0
  %396 = vmatprep.subr.mxu0 0.0
  %397 = vmatpush1.msra.mxu0 0.0
  %398 = vmatprep.subr.mxu0 0.0
  %399 = vmatpush1.msra.mxu0 0.0
  %400 = vmatprep.subr.mxu0 0.0
  %401 = vmatpush1.msra.mxu0 0.0
  %402 = vmatprep.subr.mxu0 0.0
  %403 = vmatpush1.msra.mxu0 0.0
  %404 = vmatprep.mubr.f32.mxu0 0.0
  %405 = vmatmul.mubr.f32.gmra.mrb[0].mxu0 %v337
  %v406 = vpop.f32.mrb[0].mxu0
  %v407 = vadd.f32 %v339, %v406
  %v408 = vpop.f32.mrb[0].mxu0
  %409 = vdwg.mxu0
  %v410 = vtanh.pop %v407
  %s411 = scalar_lea.vmem [#allocation2], 24
  %v412 = vld [vmem:[%s411] sm:$0xff]
  %413 = vmatprep.subr.mxu0 0.0
  %414 = vmatpush1.msra.mxu0 %v177
  %415 = vmatprep.subr.mxu0 0.0
  %416 = vmatpush1.msra.mxu0 %v178
  %417 = vmatprep.subr.mxu0 0.0
  %418 = vmatpush1.msra.mxu0 %v179
  %419 = vmatprep.subr.mxu0 0.0
  %420 = vmatpush1.msra.mxu0 %v180
  %421 = vmatprep.subr.mxu0 0.0
  %422 = vmatpush1.msra.mxu0 %v181
  %423 = vmatprep.subr.mxu0 0.0
  %424 = vmatpush1.msra.mxu0 %v182
  %425 = vmatprep.subr.mxu0 0.0
  %426 = vmatpush1.msra.mxu0 %v183
  %427 = vmatprep.subr.mxu0 0.0
  %428 = vmatpush1.msra.mxu0 %v184
  %429 = vmatprep.subr.mxu0 0.0
  %430 = vmatpush1.msra.mxu0 %v185
  %431 = vmatprep.subr.mxu0 0.0
  %432 = vmatpush1.msra.mxu0 %v186
  %433 = vmatprep.subr.mxu0 0.0
  %434 = vmatpush1.msra.mxu0 %v187
  %435 = vmatprep.subr.mxu0 0.0
  %436 = vmatpush1.msra.mxu0 %v188
  %437 = vmatprep.subr.mxu0 0.0
  %438 = vmatpush1.msra.mxu0 %v189
  %439 = vmatprep.subr.mxu0 0.0
  %440 = vmatpush1.msra.mxu0 %v190
  %441 = vmatprep.subr.mxu0 0.0
  %442 = vmatpush1.msra.mxu0 %v191
  %443 = vmatprep.subr.mxu0 0.0
  %444 = vmatpush1.msra.mxu0 %v192
  %445 = vmatprep.subr.mxu0 0.0
  %446 = vmatpush1.msra.mxu0 0.0
  %447 = vmatprep.subr.mxu0 0.0
  %448 = vmatpush1.msra.mxu0 0.0
  %449 = vmatprep.subr.mxu0 0.0
  %450 = vmatpush1.msra.mxu0 0.0
  %451 = vmatprep.subr.mxu0 0.0
  %452 = vmatpush1.msra.mxu0 0.0
  %453 = vmatprep.subr.mxu0 0.0
  %454 = vmatpush1.msra.mxu0 0.0
  %455 = vmatprep.subr.mxu0 0.0
  %456 = vmatpush1.msra.mxu0 0.0
  %457 = vmatprep.subr.mxu0 0.0
  %458 = vmatpush1.msra.mxu0 0.0
  %459 = vmatprep.subr.mxu0 0.0
  %460 = vmatpush1.msra.mxu0 0.0
  %461 = vmatprep.subr.mxu0 0.0
  %462 = vmatpush1.msra.mxu0 0.0
  %463 = vmatprep.subr.mxu0 0.0
  %464 = vmatpush1.msra.mxu0 0.0
  %465 = vmatprep.subr.mxu0 0.0
  %466 = vmatpush1.msra.mxu0 0.0
  %467 = vmatprep.subr.mxu0 0.0
  %468 = vmatpush1.msra.mxu0 0.0
  %469 = vmatprep.subr.mxu0 0.0
  %470 = vmatpush1.msra.mxu0 0.0
  %471 = vmatprep.subr.mxu0 0.0
  %472 = vmatpush1.msra.mxu0 0.0
  %473 = vmatprep.subr.mxu0 0.0
  %474 = vmatpush1.msra.mxu0 0.0
  %475 = vmatprep.subr.mxu0 0.0
  %476 = vmatpush1.msra.mxu0 0.0
  %477 = vmatprep.mubr.f32.mxu0 0.0
  %478 = vmatmul.mubr.f32.gmra.mrb[0].mxu0 %v410
  %v479 = vpop.f32.mrb[0].mxu0
  %v480 = vadd.f32 %v412, %v479
  %v481 = vpop.f32.mrb[0].mxu0
  %482 = vdwg.mxu0
  %v483 = vtanh.pop %v480
  %s484 = scalar_lea.vmem [#allocation2], 32
  %v485 = vld [vmem:[%s484] sm:$0xff]
  %486 = vmatprep.subr.mxu0 0.0
  %487 = vmatpush1.msra.mxu0 %v177
  %488 = vmatprep.subr.mxu0 0.0
  %489 = vmatpush1.msra.mxu0 %v178
  %490 = vmatprep.subr.mxu0 0.0
  %491 = vmatpush1.msra.mxu0 %v179
  %492 = vmatprep.subr.mxu0 0.0
  %493 = vmatpush1.msra.mxu0 %v180
  %494 = vmatprep.subr.mxu0 0.0
  %495 = vmatpush1.msra.mxu0 %v181
  %496 = vmatprep.subr.mxu0 0.0
  %497 = vmatpush1.msra.mxu0 %v182
  %498 = vmatprep.subr.mxu0 0.0
  %499 = vmatpush1.msra.mxu0 %v183
  %500 = vmatprep.subr.mxu0 0.0
  %501 = vmatpush1.msra.mxu0 %v184
  %502 = vmatprep.subr.mxu0 0.0
  %503 = vmatpush1.msra.mxu0 %v185
  %504 = vmatprep.subr.mxu0 0.0
  %505 = vmatpush1.msra.mxu0 %v186
  %506 = vmatprep.subr.mxu0 0.0
  %507 = vmatpush1.msra.mxu0 %v187
  %508 = vmatprep.subr.mxu0 0.0
  %509 = vmatpush1.msra.mxu0 %v188
  %510 = vmatprep.subr.mxu0 0.0
  %511 = vmatpush1.msra.mxu0 %v189
  %512 = vmatprep.subr.mxu0 0.0
  %513 = vmatpush1.msra.mxu0 %v190
  %514 = vmatprep.subr.mxu0 0.0
  %515 = vmatpush1.msra.mxu0 %v191
  %516 = vmatprep.subr.mxu0 0.0
  %517 = vmatpush1.msra.mxu0 %v192
  %518 = vmatprep.subr.mxu0 0.0
  %519 = vmatpush1.msra.mxu0 0.0
  %520 = vmatprep.subr.mxu0 0.0
  %521 = vmatpush1.msra.mxu0 0.0
  %522 = vmatprep.subr.mxu0 0.0
  %523 = vmatpush1.msra.mxu0 0.0
  %524 = vmatprep.subr.mxu0 0.0
  %525 = vmatpush1.msra.mxu0 0.0
  %526 = vmatprep.subr.mxu0 0.0
  %527 = vmatpush1.msra.mxu0 0.0
  %528 = vmatprep.subr.mxu0 0.0
  %529 = vmatpush1.msra.mxu0 0.0
  %530 = vmatprep.subr.mxu0 0.0
  %531 = vmatpush1.msra.mxu0 0.0
  %532 = vmatprep.subr.mxu0 0.0
  %533 = vmatpush1.msra.mxu0 0.0
  %534 = vmatprep.subr.mxu0 0.0
  %535 = vmatpush1.msra.mxu0 0.0
  %536 = vmatprep.subr.mxu0 0.0
  %537 = vmatpush1.msra.mxu0 0.0
  %538 = vmatprep.subr.mxu0 0.0
  %539 = vmatpush1.msra.mxu0 0.0
  %540 = vmatprep.subr.mxu0 0.0
  %541 = vmatpush1.msra.mxu0 0.0
  %542 = vmatprep.subr.mxu0 0.0
  %543 = vmatpush1.msra.mxu0 0.0
  %544 = vmatprep.subr.mxu0 0.0
  %545 = vmatpush1.msra.mxu0 0.0
  %546 = vmatprep.subr.mxu0 0.0
  %547 = vmatpush1.msra.mxu0 0.0
  %548 = vmatprep.subr.mxu0 0.0
  %549 = vmatpush1.msra.mxu0 0.0
  %550 = vmatprep.mubr.f32.mxu0 0.0
  %551 = vmatmul.mubr.f32.gmra.mrb[0].mxu0 %v483
  %v552 = vpop.f32.mrb[0].mxu0
  %v553 = vadd.f32 %v485, %v552
  %v554 = vpop.f32.mrb[0].mxu0
  %555 = vdwg.mxu0
  %v556 = vtanh.pop %v553
  %s557 = scalar_lea.vmem [#allocation2], 40
  %v558 = vld [vmem:[%s557] sm:$0xff]
  %559 = vmatprep.subr.mxu0 0.0
  %560 = vmatpush1.msra.mxu0 %v177
  %561 = vmatprep.subr.mxu0 0.0
  %562 = vmatpush1.msra.mxu0 %v178
  %563 = vmatprep.subr.mxu0 0.0
  %564 = vmatpush1.msra.mxu0 %v179
  %565 = vmatprep.subr.mxu0 0.0
  %566 = vmatpush1.msra.mxu0 %v180
  %567 = vmatprep.subr.mxu0 0.0
  %568 = vmatpush1.msra.mxu0 %v181
  %569 = vmatprep.subr.mxu0 0.0
  %570 = vmatpush1.msra.mxu0 %v182
  %571 = vmatprep.subr.mxu0 0.0
  %572 = vmatpush1.msra.mxu0 %v183
  %573 = vmatprep.subr.mxu0 0.0
  %574 = vmatpush1.msra.mxu0 %v184
  %575 = vmatprep.subr.mxu0 0.0
  %576 = vmatpush1.msra.mxu0 %v185
  %577 = vmatprep.subr.mxu0 0.0
  %578 = vmatpush1.msra.mxu0 %v186
  %579 = vmatprep.subr.mxu0 0.0
  %580 = vmatpush1.msra.mxu0 %v187
  %581 = vmatprep.subr.mxu0 0.0
  %582 = vmatpush1.msra.mxu0 %v188
  %583 = vmatprep.subr.mxu0 0.0
  %584 = vmatpush1.msra.mxu0 %v189
  %585 = vmatprep.subr.mxu0 0.0
  %586 = vmatpush1.msra.mxu0 %v190
  %587 = vmatprep.subr.mxu0 0.0
  %588 = vmatpush1.msra.mxu0 %v191
  %589 = vmatprep.subr.mxu0 0.0
  %590 = vmatpush1.msra.mxu0 %v192
  %591 = vmatprep.subr.mxu0 0.0
  %592 = vmatpush1.msra.mxu0 0.0
  %593 = vmatprep.subr.mxu0 0.0
  %594 = vmatpush1.msra.mxu0 0.0
  %595 = vmatprep.subr.mxu0 0.0
  %596 = vmatpush1.msra.mxu0 0.0
  %597 = vmatprep.subr.mxu0 0.0
  %598 = vmatpush1.msra.mxu0 0.0
  %599 = vmatprep.subr.mxu0 0.0
  %600 = vmatpush1.msra.mxu0 0.0
  %601 = vmatprep.subr.mxu0 0.0
  %602 = vmatpush1.msra.mxu0 0.0
  %603 = vmatprep.subr.mxu0 0.0
  %604 = vmatpush1.msra.mxu0 0.0
  %605 = vmatprep.subr.mxu0 0.0
  %606 = vmatpush1.msra.mxu0 0.0
  %607 = vmatprep.subr.mxu0 0.0
  %608 = vmatpush1.msra.mxu0 0.0
  %609 = vmatprep.subr.mxu0 0.0
  %610 = vmatpush1.msra.mxu0 0.0
  %611 = vmatprep.subr.mxu0 0.0
  %612 = vmatpush1.msra.mxu0 0.0
  %613 = vmatprep.subr.mxu0 0.0
  %614 = vmatpush1.msra.mxu0 0.0
  %615 = vmatprep.subr.mxu0 0.0
  %616 = vmatpush1.msra.mxu0 0.0
  %617 = vmatprep.subr.mxu0 0.0
  %618 = vmatpush1.msra.mxu0 0.0
  %619 = vmatprep.subr.mxu0 0.0
  %620 = vmatpush1.msra.mxu0 0.0
  %621 = vmatprep.subr.mxu0 0.0
  %622 = vmatpush1.msra.mxu0 0.0
  %623 = vmatprep.mubr.f32.mxu0 0.0
  %624 = vmatmul.mubr.f32.gmra.mrb[0].mxu0 %v556
  %v625 = vpop.f32.mrb[0].mxu0
  %v626 = vadd.f32 %v558, %v625
  %v627 = vpop.f32.mrb[0].mxu0
  %628 = vdwg.mxu0
  %v629 = vtanh.pop %v626
  %s630 = scalar_lea.vmem [#allocation2], 48
  %v631 = vld [vmem:[%s630] sm:$0xff]
  %632 = vmatprep.subr.mxu0 0.0
  %633 = vmatpush1.msra.mxu0 %v177
  %634 = vmatprep.subr.mxu0 0.0
  %635 = vmatpush1.msra.mxu0 %v178
  %636 = vmatprep.subr.mxu0 0.0
  %637 = vmatpush1.msra.mxu0 %v179
  %638 = vmatprep.subr.mxu0 0.0
  %639 = vmatpush1.msra.mxu0 %v180
  %640 = vmatprep.subr.mxu0 0.0
  %641 = vmatpush1.msra.mxu0 %v181
  %642 = vmatprep.subr.mxu0 0.0
  %643 = vmatpush1.msra.mxu0 %v182
  %644 = vmatprep.subr.mxu0 0.0
  %645 = vmatpush1.msra.mxu0 %v183
  %646 = vmatprep.subr.mxu0 0.0
  %647 = vmatpush1.msra.mxu0 %v184
  %648 = vmatprep.subr.mxu0 0.0
  %649 = vmatpush1.msra.mxu0 %v185
  %650 = vmatprep.subr.mxu0 0.0
  %651 = vmatpush1.msra.mxu0 %v186
  %652 = vmatprep.subr.mxu0 0.0
  %653 = vmatpush1.msra.mxu0 %v187
  %654 = vmatprep.subr.mxu0 0.0
  %655 = vmatpush1.msra.mxu0 %v188
  %656 = vmatprep.subr.mxu0 0.0
  %657 = vmatpush1.msra.mxu0 %v189
  %658 = vmatprep.subr.mxu0 0.0
  %659 = vmatpush1.msra.mxu0 %v190
  %660 = vmatprep.subr.mxu0 0.0
  %661 = vmatpush1.msra.mxu0 %v191
  %662 = vmatprep.subr.mxu0 0.0
  %663 = vmatpush1.msra.mxu0 %v192
  %664 = vmatprep.subr.mxu0 0.0
  %665 = vmatpush1.msra.mxu0 0.0
  %666 = vmatprep.subr.mxu0 0.0
  %667 = vmatpush1.msra.mxu0 0.0
  %668 = vmatprep.subr.mxu0 0.0
  %669 = vmatpush1.msra.mxu0 0.0
  %670 = vmatprep.subr.mxu0 0.0
  %671 = vmatpush1.msra.mxu0 0.0
  %672 = vmatprep.subr.mxu0 0.0
  %673 = vmatpush1.msra.mxu0 0.0
  %674 = vmatprep.subr.mxu0 0.0
  %675 = vmatpush1.msra.mxu0 0.0
  %676 = vmatprep.subr.mxu0 0.0
  %677 = vmatpush1.msra.mxu0 0.0
  %678 = vmatprep.subr.mxu0 0.0
  %679 = vmatpush1.msra.mxu0 0.0
  %680 = vmatprep.subr.mxu0 0.0
  %681 = vmatpush1.msra.mxu0 0.0
  %682 = vmatprep.subr.mxu0 0.0
  %683 = vmatpush1.msra.mxu0 0.0
  %684 = vmatprep.subr.mxu0 0.0
  %685 = vmatpush1.msra.mxu0 0.0
  %686 = vmatprep.subr.mxu0 0.0
  %687 = vmatpush1.msra.mxu0 0.0
  %688 = vmatprep.subr.mxu0 0.0
  %689 = vmatpush1.msra.mxu0 0.0
  %690 = vmatprep.subr.mxu0 0.0
  %691 = vmatpush1.msra.mxu0 0.0
  %692 = vmatprep.subr.mxu0 0.0
  %693 = vmatpush1.msra.mxu0 0.0
  %694 = vmatprep.subr.mxu0 0.0
  %695 = vmatpush1.msra.mxu0 0.0
  %696 = vmatprep.mubr.f32.mxu0 0.0
  %697 = vmatmul.mubr.f32.gmra.mrb[0].mxu0 %v629
  %v698 = vpop.f32.mrb[0].mxu0
  %v699 = vadd.f32 %v631, %v698
  %v700 = vpop.f32.mrb[0].mxu0
  %701 = vdwg.mxu0
  %v702 = vtanh.pop %v699
  %s703 = scalar_lea.vmem [#allocation2], 56
  %v704 = vld [vmem:[%s703] sm:$0xff]
  %705 = vmatprep.subr.mxu0 0.0
  %706 = vmatpush1.msra.mxu0 %v177
  %707 = vmatprep.subr.mxu0 0.0
  %708 = vmatpush1.msra.mxu0 %v178
  %709 = vmatprep.subr.mxu0 0.0
  %710 = vmatpush1.msra.mxu0 %v179
  %711 = vmatprep.subr.mxu0 0.0
  %712 = vmatpush1.msra.mxu0 %v180
  %713 = vmatprep.subr.mxu0 0.0
  %714 = vmatpush1.msra.mxu0 %v181
  %715 = vmatprep.subr.mxu0 0.0
  %716 = vmatpush1.msra.mxu0 %v182
  %717 = vmatprep.subr.mxu0 0.0
  %718 = vmatpush1.msra.mxu0 %v183
  %719 = vmatprep.subr.mxu0 0.0
  %720 = vmatpush1.msra.mxu0 %v184
  %721 = vmatprep.subr.mxu0 0.0
  %722 = vmatpush1.msra.mxu0 %v185
  %723 = vmatprep.subr.mxu0 0.0
  %724 = vmatpush1.msra.mxu0 %v186
  %725 = vmatprep.subr.mxu0 0.0
  %726 = vmatpush1.msra.mxu0 %v187
  %727 = vmatprep.subr.mxu0 0.0
  %728 = vmatpush1.msra.mxu0 %v188
  %729 = vmatprep.subr.mxu0 0.0
  %730 = vmatpush1.msra.mxu0 %v189
  %731 = vmatprep.subr.mxu0 0.0
  %732 = vmatpush1.msra.mxu0 %v190
  %733 = vmatprep.subr.mxu0 0.0
  %734 = vmatpush1.msra.mxu0 %v191
  %735 = vmatprep.subr.mxu0 0.0
  %736 = vmatpush1.msra.mxu0 %v192
  %737 = vmatprep.subr.mxu0 0.0
  %738 = vmatpush1.msra.mxu0 0.0
  %739 = vmatprep.subr.mxu0 0.0
  %740 = vmatpush1.msra.mxu0 0.0
  %741 = vmatprep.subr.mxu0 0.0
  %742 = vmatpush1.msra.mxu0 0.0
  %743 = vmatprep.subr.mxu0 0.0
  %744 = vmatpush1.msra.mxu0 0.0
  %745 = vmatprep.subr.mxu0 0.0
  %746 = vmatpush1.msra.mxu0 0.0
  %747 = vmatprep.subr.mxu0 0.0
  %748 = vmatpush1.msra.mxu0 0.0
  %749 = vmatprep.subr.mxu0 0.0
  %750 = vmatpush1.msra.mxu0 0.0
  %751 = vmatprep.subr.mxu0 0.0
  %752 = vmatpush1.msra.mxu0 0.0
  %753 = vmatprep.subr.mxu0 0.0
  %754 = vmatpush1.msra.mxu0 0.0
  %755 = vmatprep.subr.mxu0 0.0
  %756 = vmatpush1.msra.mxu0 0.0
  %757 = vmatprep.subr.mxu0 0.0
  %758 = vmatpush1.msra.mxu0 0.0
  %759 = vmatprep.subr.mxu0 0.0
  %760 = vmatpush1.msra.mxu0 0.0
  %761 = vmatprep.subr.mxu0 0.0
  %762 = vmatpush1.msra.mxu0 0.0
  %763 = vmatprep.subr.mxu0 0.0
  %764 = vmatpush1.msra.mxu0 0.0
  %765 = vmatprep.subr.mxu0 0.0
  %766 = vmatpush1.msra.mxu0 0.0
  %767 = vmatprep.subr.mxu0 0.0
  %768 = vmatpush1.msra.mxu0 0.0
  %769 = vmatprep.mubr.f32.mxu0 0.0
  %770 = vmatmul.mubr.f32.gmra.mrb[0].mxu0 %v702
  %v771 = vpop.f32.mrb[0].mxu0
  %v772 = vadd.f32 %v704, %v771
  %v773 = vpop.f32.mrb[0].mxu0
  %774 = vdwg.mxu0
  %v775 = vtanh.pop %v772
  %v776 = vld [vmem:[%s4] sm:$0xff]
  %v777 = vld [vmem:[%s4 + $0x8] sm:$0xff]
  %v778 = vld [vmem:[%s4 + $0x10] sm:$0xff]
  %v779 = vld [vmem:[%s4 + $0x18] sm:$0xff]
  %v780 = vld [vmem:[%s4 + $0x20] sm:$0xff]
  %v781 = vld [vmem:[%s4 + $0x28] sm:$0xff]
  %v782 = vld [vmem:[%s4 + $0x30] sm:$0xff]
  %v783 = vld [vmem:[%s4 + $0x38] sm:$0xff]
  %v784 = vld [vmem:[%s4 + $0x40] sm:$0xff]
  %v785 = vld [vmem:[%s4 + $0x48] sm:$0xff]
  %v786 = vld [vmem:[%s4 + $0x50] sm:$0xff]
  %v787 = vld [vmem:[%s4 + $0x58] sm:$0xff]
  %v788 = vld [vmem:[%s4 + $0x60] sm:$0xff]
  %v789 = vld [vmem:[%s4 + $0x68] sm:$0xff]
  %v790 = vld [vmem:[%s4 + $0x70] sm:$0xff]
  %v791 = vld [vmem:[%s4 + $0x78] sm:$0xff]
  %v792 = vld [vmem:[%s5] sm:$0x1]
  %v794 = vlaneseq
  %v795 = vshrl.u32 %v794, 7
  %v796 = vsub.s32 0, %v795
  %v797 = vrot.slane %v792, %v796
  %799 = vmatprep.subr.mxu0 0.0
  %800 = vmatpush1.msra.mxu0 %v776
  %801 = vmatprep.subr.mxu0 0.0
  %802 = vmatpush1.msra.mxu0 %v777
  %803 = vmatprep.subr.mxu0 0.0
  %804 = vmatpush1.msra.mxu0 %v778
  %805 = vmatprep.subr.mxu0 0.0
  %806 = vmatpush1.msra.mxu0 %v779
  %807 = vmatprep.subr.mxu0 0.0
  %808 = vmatpush1.msra.mxu0 %v780
  %809 = vmatprep.subr.mxu0 0.0
  %810 = vmatpush1.msra.mxu0 %v781
  %811 = vmatprep.subr.mxu0 0.0
  %812 = vmatpush1.msra.mxu0 %v782
  %813 = vmatprep.subr.mxu0 0.0
  %814 = vmatpush1.msra.mxu0 %v783
  %815 = vmatprep.subr.mxu0 0.0
  %816 = vmatpush1.msra.mxu0 %v784
  %817 = vmatprep.subr.mxu0 0.0
  %818 = vmatpush1.msra.mxu0 %v785
  %819 = vmatprep.subr.mxu0 0.0
  %820 = vmatpush1.msra.mxu0 %v786
  %821 = vmatprep.subr.mxu0 0.0
  %822 = vmatpush1.msra.mxu0 %v787
  %823 = vmatprep.subr.mxu0 0.0
  %824 = vmatpush1.msra.mxu0 %v788
  %825 = vmatprep.subr.mxu0 0.0
  %826 = vmatpush1.msra.mxu0 %v789
  %827 = vmatprep.subr.mxu0 0.0
  %828 = vmatpush1.msra.mxu0 %v790
  %829 = vmatprep.subr.mxu0 0.0
  %830 = vmatpush1.msra.mxu0 %v791
  %831 = vmatprep.subr.mxu0 0.0
  %832 = vmatpush1.msra.mxu0 0.0
  %833 = vmatprep.subr.mxu0 0.0
  %834 = vmatpush1.msra.mxu0 0.0
  %835 = vmatprep.subr.mxu0 0.0
  %836 = vmatpush1.msra.mxu0 0.0
  %837 = vmatprep.subr.mxu0 0.0
  %838 = vmatpush1.msra.mxu0 0.0
  %839 = vmatprep.subr.mxu0 0.0
  %840 = vmatpush1.msra.mxu0 0.0
  %841 = vmatprep.subr.mxu0 0.0
  %842 = vmatpush1.msra.mxu0 0.0
  %843 = vmatprep.subr.mxu0 0.0
  %844 = vmatpush1.msra.mxu0 0.0
  %845 = vmatprep.subr.mxu0 0.0
  %846 = vmatpush1.msra.mxu0 0.0
  %847 = vmatprep.subr.mxu0 0.0
  %848 = vmatpush1.msra.mxu0 0.0
  %849 = vmatprep.subr.mxu0 0.0
  %850 = vmatpush1.msra.mxu0 0.0
  %851 = vmatprep.subr.mxu0 0.0
  %852 = vmatpush1.msra.mxu0 0.0
  %853 = vmatprep.subr.mxu0 0.0
  %854 = vmatpush1.msra.mxu0 0.0
  %855 = vmatprep.subr.mxu0 0.0
  %856 = vmatpush1.msra.mxu0 0.0
  %857 = vmatprep.subr.mxu0 0.0
  %858 = vmatpush1.msra.mxu0 0.0
  %859 = vmatprep.subr.mxu0 0.0
  %860 = vmatpush1.msra.mxu0 0.0
  %861 = vmatprep.subr.mxu0 0.0
  %862 = vmatpush1.msra.mxu0 0.0
  %863 = vmatprep.mubr.f32.mxu0 0.0
  %864 = vmatmul.mubr.f32.gmra.mrb[0].mxu0 %v775
  %v865 = vpop.f32.mrb[0].mxu0
  %v866 = vadd.f32 %v797, %v865
  %v867 = vpop.f32.mrb[0].mxu0
  %868 = vdwg.mxu0
  %869 = vst [vmem:[%s6] sm:$0xff] %v866
  // Predicated region
  $region26: #{_forward_impl.1} parent=0 // pred_check
    _
  $region27: #{_forward_impl.1} parent=0 // pred_check_branch
    %871 = sbr.rel (0) target = $region29
  $region28: #{_forward_impl.1} parent=0 // pred_region
    _
  $region29: #{_forward_impl.1} parent=0 // pred_fallthru
    _
  // Predicated region
  $region30: #{_forward_impl.1} parent=0 // pred_check
    _
  $region31: #{_forward_impl.1} parent=0 // pred_check_branch
    %873 = sbr.rel (0) target = $region33
  $region32: #{_forward_impl.1} parent=0 // pred_region
    _
  $region33: #{_forward_impl.1} parent=0 // pred_fallthru
    _

</llo_original>
